<compile_context>
chip_gen: v5e
topology: v5e:2x2
jax: 0.10.0
libtpu: 0.0.40
codegen_flags: <defaults>
</compile_context>

<pallas_src>
import functools

import jax
import jax.numpy as jnp
from jax.experimental import pallas as pl
from jax.experimental.pallas import tpu as pltpu

KERNEL_SIZE = 3          # ECABlock default Conv1d kernel size
_LANES = 128


def _round_up(x, m):
    return (x + m - 1) // m * m


def _cdiv(a, b):
    return (a + b - 1) // b


def _sublane_multiple(dtype):
    # f32 -> 8 sublanes per VMEM tile, bf16 -> 16, int8/fp8 -> 32.
    return max(8, 32 // jnp.dtype(dtype).itemsize)


def _vmem_budget_and_capacity():
    """(per-pipelined-buffer tile budget in bytes, physical VMEM capacity in bytes)."""
    cap = 128 << 20
    try:
        info = pltpu.get_tpu_info()
        cap = int(getattr(info, "vmem_capacity_bytes", cap))
    except Exception:
        pass
    kind = ""
    try:
        kind = jax.devices()[0].device_kind.lower()
    except Exception:
        pass
    if cap <= (64 << 20):        # v7x-class: 64 MiB physical VMEM per TensorCore
        per_buf = 7 << 20
    elif "v5" in kind:           # v5e: slower HBM, little gain from giant tiles
        per_buf = 8 << 20
    else:                        # v6e-class: 128 MiB physical VMEM, fast HBM
        per_buf = 14 << 20
    return per_buf, cap


def _choose_tiling(n, c, hw, dtype, budget):
    """Return (b_blk, t_hw, n_spatial_tiles) using VMEM-padded byte accounting."""
    itemsize = jnp.dtype(dtype).itemsize
    sub = _sublane_multiple(dtype)
    row_bytes = _round_up(c, sub) * itemsize                 # padded bytes per spatial lane
    full_tile = row_bytes * _round_up(hw, _LANES)            # one batch element, full H*W
    if full_tile <= budget:
        # Whole spatial extent per grid step; fold batch elements so DMAs stay large
        # (critical for small-HW layers such as 14x14 / 7x7 stages).
        b_blk = max(1, budget // full_tile)
        b_blk = min(b_blk, n)
        if n >= 2:
            b_blk = min(b_blk, _cdiv(n, 2))  # keep >= 2 batch blocks for v7x megacore
        return b_blk, hw, 1
    # Large spatial extent: one batch element per step, tile the flattened spatial axis.
    max_lanes = max(_LANES, (budget // row_bytes) // _LANES * _LANES)
    if hw % _LANES == 0:
        t_hw = _LANES
        t = _LANES
        while t <= max_lanes:                                # prefer an exact divisor of hw
            if hw % t == 0:
                t_hw = t
            t += _LANES
    else:
        t_hw = max_lanes                                     # ragged last tile, masked in-kernel
    return 1, t_hw, _cdiv(hw, t_hw)


def eca_kernel(w_ref, x_ref, o_ref, acc_ref, *, channels, cp, hw, t_hw,
               inv_hw, kernel_size, ragged_hw):
    # w_ref  : (K,) f32 in SMEM            -- Conv1d(1, 1, K) weight, flattened
    # x_ref  : (b_blk, C, T_hw) in VMEM    -- spatial tile, native dtype
    # o_ref  : (b_blk, 1, Cp) in VMEM      -- sigmoid(conv1d(GAP(x))), lane-dense
    # acc_ref: (b_blk, Cp) f32 VMEM scratch -- running spatial sum, persists across the grid
    s = pl.program_id(1)

    @pl.when(s == 0)
    def _init():
        acc_ref[...] = jnp.zeros_like(acc_ref)

    xt = x_ref[...].astype(jnp.float32)                       # (b_blk, C, T_hw)
    if ragged_hw:
        # Last spatial tile extends past H*W: mask the out-of-bounds lanes (instead of
        # materializing a zero-padded copy of x in HBM).
        lane3 = jax.lax.broadcasted_iota(jnp.int32, (1, 1, t_hw), 2)
        xt = jnp.where(s * t_hw + lane3 < hw, xt, 0.0)
    part = jnp.sum(xt, axis=-1)                                # (b_blk, C)

    # Full-width (unmasked) accumulator store when C is already lane-aligned; otherwise a
    # masked partial-lane store (C < 128) is unavoidable and cheap.
    if channels == cp:
        acc_ref[...] += part
    else:
        acc_ref[:, :channels] += part

    @pl.when(s == pl.num_programs(1) - 1)
    def _finalize():
        pad = kernel_size // 2
        gap = acc_ref[...] * inv_hw                            # (b_blk, Cp); lanes >= C are 0
        lane = jax.lax.broadcasted_iota(jnp.int32, gap.shape, 1)
        y = jnp.zeros_like(gap)
        for k in range(kernel_size):                           # static unroll
            off = k - pad                                      # tap k reads gap[i + off]
            if off == 0:
                tap = gap
            else:
                # jnp.roll convention: roll(gap, -off)[i] == gap[i + off] (circular),
                # then zero the wrapped / out-of-range taps -> Conv1d zero padding.
                tap = pltpu.roll(gap, shift=(-off) % cp, axis=1)
                valid = jnp.logical_and(lane + off >= 0, lane + off < channels)
                tap = jnp.where(valid, tap, 0.0)
            y = y + w_ref[k] * tap
        o_ref[:, 0, :] = jax.nn.sigmoid(y).astype(o_ref.dtype)


def eca_block(x, conv_weight):
    """x: (N, C, H, W); conv_weight: (1, 1, K) (torch Conv1d weight layout).

    Returns the ECA attention map with shape (N, C, 1, 1) and dtype of x,
    matching the PyTorch module's forward() output.
    """
    n, c, h, w = x.shape
    hw = h * w
    w_flat = conv_weight.reshape(-1).astype(jnp.float32)
    k_size = int(w_flat.shape[0])
    assert k_size % 2 == 1, "ECABlock Conv1d kernel size must be odd (default 3)"

    itemsize = jnp.dtype(x.dtype).itemsize
    budget, vmem_cap = _vmem_budget_and_capacity()
    b_blk, t_hw, n_sp = _choose_tiling(n, c, hw, x.dtype, budget)
    ragged_hw = (hw % t_hw) != 0
    cp = _round_up(c, _LANES)

    x_flat = x.reshape(n, c, hw)                 # free reshape; keep native dtype, no padding

    grid = (_cdiv(n, b_blk), n_sp)

    # VMEM accounting: double-buffered input & output blocks with sublane/lane padding,
    # plus the persistent accumulator and headroom; clamp to 75% of physical capacity.
    sub_x = _sublane_multiple(x.dtype)
    in_tile = b_blk * _round_up(c, sub_x) * _round_up(t_hw, _LANES) * itemsize
    out_tile = b_blk * _round_up(1, sub_x) * cp * itemsize
    acc_bytes = _round_up(b_blk, 8) * cp * 4
    vmem_needed = 2 * in_tile + 2 * out_tile + acc_bytes + (2 << 20)
    vmem_limit = int(min(max(vmem_needed, 16 << 20), (vmem_cap * 3) // 4))

    kernel = functools.partial(
        eca_kernel, channels=c, cp=cp, hw=hw, t_hw=t_hw,
        inv_hw=1.0 / float(hw), kernel_size=k_size, ragged_hw=ragged_hw)

    out = pl.pallas_call(
        kernel,
        out_shape=jax.ShapeDtypeStruct((n, 1, cp), x.dtype),
        grid=grid,
        in_specs=[
            pl.BlockSpec(memory_space=pltpu.MemorySpace.SMEM),        # conv weight (K,)
            pl.BlockSpec((b_blk, c, t_hw), lambda b, s: (b, 0, s)),   # streamed x tile
        ],
        out_specs=pl.BlockSpec((b_blk, 1, cp), lambda b, s: (b, 0, 0)),
        scratch_shapes=[pltpu.VMEM((b_blk, cp), jnp.float32)],
        compiler_params=pltpu.CompilerParams(
            dimension_semantics=("parallel", "arbitrary"),
            vmem_limit_bytes=vmem_limit),
        cost_estimate=pl.CostEstimate(
            flops=int(n * c * hw + 2 * k_size * n * cp),
            transcendentals=int(n * cp),
            bytes_accessed=int(n * c * hw * itemsize + n * cp * itemsize + k_size * 4)),
    )(w_flat, x_flat)

    return out[:, 0, :c].reshape(n, c, 1, 1)


def eca_block_reference(x, conv_weight):
    """Pure-JAX reference mirroring the PyTorch forward exactly."""
    gap = jnp.mean(x.astype(jnp.float32), axis=(2, 3))                 # (N, C)
    wk = conv_weight.reshape(-1).astype(jnp.float32)                   # (K,)
    k_size = wk.shape[0]
    pad = k_size // 2
    gp = jnp.pad(gap, ((0, 0), (pad, pad)))
    y = jnp.zeros_like(gap)
    for k in range(k_size):
        y = y + wk[k] * gp[:, k:k + gap.shape[1]]
    return jax.nn.sigmoid(y).astype(x.dtype)[:, :, None, None]


if __name__ == "__main__":
    key = jax.random.PRNGKey(0)
    kx, kw = jax.random.split(key)

    N, C, H, W = 2, 4, 16, 16
    x = jax.random.normal(kx, (N, C, H, W), dtype=jnp.float32)
    # Deterministic synthetic Conv1d(1, 1, 3, bias=False) weight.
    conv_weight = 0.3 * jax.random.normal(kw, (1, 1, KERNEL_SIZE), dtype=jnp.float32)

    out = jax.block_until_ready(eca_block(x, conv_weight))
    ref = eca_block_reference(x, conv_weight)

    assert out.shape == (N, C, 1, 1), out.shape
    assert jnp.allclose(out, ref, rtol=1e-5, atol=1e-5), "mismatch vs reference"

    print("KERNEL_OK")
</pallas_src>

<mosaic_0001>
module attributes {stable_mosaic.version = 11 : i64} {
  func.func @eca_kernel(%arg0: i32, %arg1: i32, %arg2: memref<3xf32, #tpu.memory_space<smem>>, %arg3: memref<1x4x256xf32, #tpu.memory_space<vmem>>, %arg4: memref<1x1x128xf32, #tpu.memory_space<vmem>>, %arg5: memref<1x128xf32, #tpu.memory_space<vmem>>) attributes {dimension_semantics = [#tpu.dimension_semantics<parallel>, #tpu.dimension_semantics<arbitrary>], iteration_bounds = array<i64: 2, 1>, scalar_prefetch = 0 : i64, scratch_operands = 1 : i64, tpu.core_type = #tpu.core_type<tc>, window_params = [{transform_indices = @transform_0, window_bounds = array<i64: 3>}, {transform_indices = @transform_1, window_bounds = array<i64: 1, 4, 256>}, {transform_indices = @transform_2, window_bounds = array<i64: 1, 1, 128>}]} {
    %c0_i32 = arith.constant 0 : i32
    %0 = arith.cmpi eq, %arg1, %c0_i32 : i32
    %1 = arith.extui %0 : i1 to i32
    %c0_i32_0 = arith.constant 0 : i32
    %2 = arith.cmpi ne, %1, %c0_i32_0 : i32
    scf.if %2 {
      %cst_9 = arith.constant 0.000000e+00 : f32
      %11 = vector.broadcast %cst_9 : f32 to vector<1x128xf32>
      %c0_10 = arith.constant 0 : index
      %c0_11 = arith.constant 0 : index
      %12 = vector.load %arg5[%c0_10, %c0_11] : memref<1x128xf32, #tpu.memory_space<vmem>>, vector<1x128xf32>
      tpu.vector_store %arg5[%c0_10, %c0_11], %11 {strides = array<i32>} : memref<1x128xf32, #tpu.memory_space<vmem>>, vector<1x128xf32>,
    } else {
    }
    %c0 = arith.constant 0 : index
    %c0_1 = arith.constant 0 : index
    %c0_2 = arith.constant 0 : index
    %3 = vector.load %arg3[%c0, %c0_1, %c0_2] : memref<1x4x256xf32, #tpu.memory_space<vmem>>, vector<1x4x256xf32>
    %cst = arith.constant dense<0.000000e+00> : vector<1x4xf32>
    %4 = vector.multi_reduction <add>, %3, %cst [2] : vector<1x4x256xf32> to vector<1x4xf32>
    %c0_3 = arith.constant 0 : index
    %c0_4 = arith.constant 0 : index
    %5 = vector.load %arg5[%c0_3, %c0_4] : memref<1x128xf32, #tpu.memory_space<vmem>>, vector<1x4xf32>
    %6 = arith.addf %5, %4 : vector<1x4xf32>
    %c0_5 = arith.constant 0 : index
    %c0_6 = arith.constant 0 : index
    %7 = vector.load %arg5[%c0_5, %c0_6] : memref<1x128xf32, #tpu.memory_space<vmem>>, vector<1x4xf32>
    tpu.vector_store %arg5[%c0_5, %c0_6], %6 {strides = array<i32>} : memref<1x128xf32, #tpu.memory_space<vmem>>, vector<1x4xf32>,
    %c0_i32_7 = arith.constant 0 : i32
    %8 = arith.cmpi eq, %arg1, %c0_i32_7 : i32
    %9 = arith.extui %8 : i1 to i32
    %c0_i32_8 = arith.constant 0 : i32
    %10 = arith.cmpi ne, %9, %c0_i32_8 : i32
    scf.if %10 {
      %c0_9 = arith.constant 0 : index
      %c0_10 = arith.constant 0 : index
      %11 = vector.load %arg5[%c0_9, %c0_10] : memref<1x128xf32, #tpu.memory_space<vmem>>, vector<1x128xf32>
      %cst_11 = arith.constant 3.906250e-03 : f32
      %12 = vector.broadcast %cst_11 : f32 to vector<1x128xf32>
      %13 = arith.mulf %11, %12 : vector<1x128xf32>
      %14 = tpu.iota {dimensions = array<i32: 1>} : vector<1x128xi32>
      %cst_12 = arith.constant 0.000000e+00 : f32
      %15 = vector.broadcast %cst_12 : f32 to vector<1x128xf32>
      %c1_i32 = arith.constant 1 : i32
      %16 = tpu.dynamic_rotate %13 by %c1_i32 dim 1 : vector<1x128xf32>, i32 -> vector<1x128xf32>
      %c-1_i32 = arith.constant -1 : i32
      %17 = vector.broadcast %c-1_i32 : i32 to vector<1x128xi32>
      %18 = arith.addi %14, %17 : vector<1x128xi32>
      %c0_i32_13 = arith.constant 0 : i32
      %19 = vector.broadcast %c0_i32_13 : i32 to vector<1x128xi32>
      %20 = arith.cmpi sge, %18, %19 : vector<1x128xi32>
      %c-1_i32_14 = arith.constant -1 : i32
      %21 = vector.broadcast %c-1_i32_14 : i32 to vector<1x128xi32>
      %22 = arith.addi %14, %21 : vector<1x128xi32>
      %c4_i32 = arith.constant 4 : i32
      %23 = vector.broadcast %c4_i32 : i32 to vector<1x128xi32>
      %24 = arith.cmpi slt, %22, %23 : vector<1x128xi32>
      %25 = arith.andi %20, %24 : vector<1x128xi1>
      %cst_15 = arith.constant 0.000000e+00 : f32
      %26 = vector.broadcast %cst_15 : f32 to vector<1x128xf32>
      %27 = arith.select %25, %16, %26 : vector<1x128xi1>, vector<1x128xf32>
      %c0_16 = arith.constant 0 : index
      %28 = memref.load %arg2[%c0_16] : memref<3xf32, #tpu.memory_space<smem>>
      %29 = vector.broadcast %28 : f32 to vector<1x128xf32>
      %30 = arith.mulf %29, %27 : vector<1x128xf32>
      %31 = arith.addf %15, %30 : vector<1x128xf32>
      %c1 = arith.constant 1 : index
      %32 = memref.load %arg2[%c1] : memref<3xf32, #tpu.memory_space<smem>>
      %33 = vector.broadcast %32 : f32 to vector<1x128xf32>
      %34 = arith.mulf %33, %13 : vector<1x128xf32>
      %35 = arith.addf %31, %34 : vector<1x128xf32>
      %c127_i32 = arith.constant 127 : i32
      %36 = tpu.dynamic_rotate %13 by %c127_i32 dim 1 : vector<1x128xf32>, i32 -> vector<1x128xf32>
      %c1_i32_17 = arith.constant 1 : i32
      %37 = vector.broadcast %c1_i32_17 : i32 to vector<1x128xi32>
      %38 = arith.addi %14, %37 : vector<1x128xi32>
      %c0_i32_18 = arith.constant 0 : i32
      %39 = vector.broadcast %c0_i32_18 : i32 to vector<1x128xi32>
      %40 = arith.cmpi sge, %38, %39 : vector<1x128xi32>
      %c1_i32_19 = arith.constant 1 : i32
      %41 = vector.broadcast %c1_i32_19 : i32 to vector<1x128xi32>
      %42 = arith.addi %14, %41 : vector<1x128xi32>
      %c4_i32_20 = arith.constant 4 : i32
      %43 = vector.broadcast %c4_i32_20 : i32 to vector<1x128xi32>
      %44 = arith.cmpi slt, %42, %43 : vector<1x128xi32>
      %45 = arith.andi %40, %44 : vector<1x128xi1>
      %cst_21 = arith.constant 0.000000e+00 : f32
      %46 = vector.broadcast %cst_21 : f32 to vector<1x128xf32>
      %47 = arith.select %45, %36, %46 : vector<1x128xi1>, vector<1x128xf32>
      %c2 = arith.constant 2 : index
      %48 = memref.load %arg2[%c2] : memref<3xf32, #tpu.memory_space<smem>>
      %49 = vector.broadcast %48 : f32 to vector<1x128xf32>
      %50 = arith.mulf %49, %47 : vector<1x128xf32>
      %51 = arith.addf %35, %50 : vector<1x128xf32>
      %52 = arith.negf %51 : vector<1x128xf32>
      %53 = math.exp %52 : vector<1x128xf32>
      %cst_22 = arith.constant 1.000000e+00 : f32
      %54 = vector.broadcast %cst_22 : f32 to vector<1x128xf32>
      %55 = arith.addf %54, %53 : vector<1x128xf32>
      %56 = arith.divf %54, %55 : vector<1x128xf32>
      %c0_23 = arith.constant 0 : index
      %c0_24 = arith.constant 0 : index
      %c0_25 = arith.constant 0 : index
      %57 = vector.load %arg4[%c0_23, %c0_24, %c0_25] : memref<1x1x128xf32, #tpu.memory_space<vmem>>, vector<1x1x128xf32>
      %58 = vector.shape_cast %57 : vector<1x1x128xf32> to vector<1x128xf32>
      %59 = vector.shape_cast %56 : vector<1x128xf32> to vector<1x1x128xf32>
      tpu.vector_store %arg4[%c0_23, %c0_24, %c0_25], %59 {strides = array<i32>} : memref<1x1x128xf32, #tpu.memory_space<vmem>>, vector<1x1x128xf32>,
    } else {
    }
    return
  }
  func.func @transform_0(%arg0: i32, %arg1: i32) -> i32 {
    %c0_i32 = arith.constant 0 : i32
    %c0_i32_0 = arith.constant 0 : i32
    return %c0_i32 : i32
  }
  func.func @transform_1(%arg0: i32, %arg1: i32) -> (i32, i32, i32) {
    %c0_i32 = arith.constant 0 : i32
    %c0_i32_0 = arith.constant 0 : i32
    return %arg0, %c0_i32, %arg1 : i32, i32, i32
  }
  func.func @transform_2(%arg0: i32, %arg1: i32) -> (i32, i32, i32) {
    %c0_i32 = arith.constant 0 : i32
    %c0_i32_0 = arith.constant 0 : i32
    %c0_i32_1 = arith.constant 0 : i32
    return %arg0, %c0_i32, %c0_i32_0 : i32, i32, i32
  }
}

</mosaic_0001>

<llo_original>
// kernel: tpu_custom_call.1
$region0: #{tpu_custom_call.1}
  #allocation0 [shape = 'u32[]', space=smem, size = 0x4, offset = 0x4, fixed_abs, tag = 'smem constant byte address 0x4 - core index']
  #allocation1 [shape = 'u32[72,128]{1,0:T(1,128)}', space=vmem, size = 0x9000, scoped, tag = 'internal scratch']
  #allocation2 [shape = 'f32[1,128]{1,0:T(1,128)}', space=vmem, size = 0x200, scoped, tag = 'scratch operand']
  %s0 = inlined_call_operand.hbm [shape: f32[3], index: 0, kind: input, shape index: {}]
  %s1 = inlined_call_operand.hbm [shape: f32[2,4,256], index: 1, kind: input, shape index: {}]
  %s2 = inlined_call_operand.hbm [shape: f32[2,1,128], index: 2, kind: output, shape index: {}]
  %s3 = sld [smem:[#allocation0]]
  $region57: #{tpu_custom_call.1} parent=0
    _
  %s5 = ssub.s32 1, %s3
  %s6 = scalar_select 0, %s5, %s3
  $region1: #{tpu_custom_call.1} parent=0
    #allocation3 [shape = 'u8[512]{0}', space=smem, size = 0x200, scoped, tag = 'input window, operand 0, single buffered']
    #allocation4 [shape = 's32[2]{0}', space=sflag, size = 0x8, scoped, tag = 'scoped memory for tpu_custom_call.1']
    #allocation5 [shape = 's32[2]{0}', space=sflag, size = 0x8, scoped, tag = 'scoped memory for tpu_custom_call.1']
    #allocation6 [shape = 's32[2]{0}', space=sflag, size = 0x8, scoped, tag = 'scoped memory for tpu_custom_call.1']
    #allocation7 [shape = 'u8[8192]{0}', space=vmem, size = 0x2000, scoped, tag = 'input window, operand 1']
    #allocation8 [shape = 'u8[1024]{0}', space=vmem, size = 0x400, scoped, tag = 'output window, operand 0']
    %7 = vsyncpa [#allocation6], 0
    %8 = vsyncpa [#allocation4], 0
    %s9 = scalar_lea.sflag [#allocation4], 1
    %10 = vsyncpa %s9, 0
    %11 = vsyncpa [#allocation5], 0
    %s12 = scalar_lea.sflag [#allocation5], 1
    %13 = vsyncpa %s12, 0
    loop: start=0, step=1, limit=4
    $region2: #{tpu_custom_call.1} parent=1 // loop_pre_header
      _
    $region3: #{tpu_custom_call.1} parent=1 // loop_header
      %s15 = sphi 0, %s19
      %p16 = scmp.ge.s32.totalorder %s15, 4
      %s22 = sphi 0, %s34
      %s23 = sphi 0, %s30
      %s24 = sphi 0, %s22
      %s25 = sphi 0, %s23
      %s26 = sphi 0, %s24
      %s27 = sphi 0, %s25
      %s35 = sphi 0, %s35
      %s37 = sphi 0, %s35
      %s38 = sphi 0, %s37
      %s52 = sphi 0, %s38
      %s60 = sphi 0, %s62
      %s63 = sphi 0, %s60
      %s64 = sphi 0, %s63
      %s80 = sphi 0, %s64
      %s86 = sphi 0, %s88
      %s89 = sphi 0, %s86
      %s90 = sphi 0, %s89
      %s106 = sphi 0, %s90
    $region4: #{tpu_custom_call.1} parent=1 // loop_header_branch
      %18 = sbr.rel (%p16) target = $region8
    $region5: #{tpu_custom_call.1} parent=1 // loop_body
      %s20 = ssub.s32 %s15, 1
      %s21 = ssub.s32 %s15, 2
      %s28 = sadd.s32 1, %s23
      %p29 = scmp.ge.s32.totalorder %s28, 1
      %s30 = scalar_select %p29, 0, %s28
      %s31 = sadd.s32 1, %s22
      %s32 = scalar_select %p29, %s31, %s22
      %p33 = scmp.ge.s32.totalorder %s32, 2
      %s34 = scalar_select %p33, 0, %s32
      %s36 = sadd.s32 %s35, 1
      %p39 = scmp.eq.s32.totalorder %s15, 1
      %p40 = scmp.ne.s32.totalorder %s35, %s37
      %p41 = scmp.eq.s32.totalorder %s15, 0
      %p42 = por %p40, %p41
      %p43 = scmp.ne.s32.totalorder %s35, %s37
      %p44 = scmp.eq.s32.totalorder %s20, 1
      %p45 = por %p43, %p44
      %p46 = scmp.ne.s32.totalorder %s37, %s38
      %p47 = scmp.eq.s32.totalorder %s20, 0
      %p48 = por %p46, %p47
      %p49 = scmp.ne.s32.totalorder %s37, %s38
      %p50 = scmp.eq.s32.totalorder %s21, 1
      %p51 = por %p49, %p50
      %p53 = scmp.ne.s32.totalorder %s38, %s52
      %p54 = scmp.eq.s32.totalorder %s21, 0
      %p55 = por %p53, %p54
      %s56 = ssub.s32 %s22, %s34
      %s57 = ssub.s32 %s23, %s30
      %s58 = sor.u32 %s56, %s57
      %p59 = scmp.eq.s32.totalorder %s58, 0
      %s61 = sadd.s32 %s60, 1
      %s62 = scalar_select %p59, %s60, %s61
      %p65 = pneg %p59
      %p66 = scmp.eq.s32.totalorder %s15, 1
      %p67 = por %p65, %p66
      %p68 = scmp.ne.s32.totalorder %s60, %s63
      %p69 = scmp.eq.s32.totalorder %s15, 0
      %p70 = por %p68, %p69
      %p71 = scmp.ne.s32.totalorder %s60, %s63
      %p72 = scmp.eq.s32.totalorder %s20, 1
      %p73 = por %p71, %p72
      %p74 = scmp.ne.s32.totalorder %s63, %s64
      %p75 = scmp.eq.s32.totalorder %s20, 0
      %p76 = por %p74, %p75
      %p77 = scmp.ne.s32.totalorder %s63, %s64
      %p78 = scmp.eq.s32.totalorder %s21, 1
      %p79 = por %p77, %p78
      %p81 = scmp.ne.s32.totalorder %s64, %s80
      %p82 = scmp.eq.s32.totalorder %s21, 0
      %p83 = por %p81, %p82
      %s84 = ssub.s32 %s22, %s34
      %p85 = scmp.eq.s32.totalorder %s84, 0
      %s87 = sadd.s32 %s86, 1
      %s88 = scalar_select %p85, %s86, %s87
      %p91 = pneg %p85
      %p92 = scmp.eq.s32.totalorder %s15, 1
      %p93 = por %p91, %p92
      %p94 = scmp.ne.s32.totalorder %s86, %s89
      %p95 = scmp.eq.s32.totalorder %s15, 0
      %p96 = por %p94, %p95
      %p97 = scmp.ne.s32.totalorder %s86, %s89
      %p98 = scmp.eq.s32.totalorder %s20, 1
      %p99 = por %p97, %p98
      %p100 = scmp.ne.s32.totalorder %s89, %s90
      %p101 = scmp.eq.s32.totalorder %s20, 0
      %p102 = por %p100, %p101
      %p103 = scmp.ne.s32.totalorder %s89, %s90
      %p104 = scmp.eq.s32.totalorder %s21, 1
      %p105 = por %p103, %p104
      %p107 = scmp.ne.s32.totalorder %s90, %s106
      %p108 = scmp.eq.s32.totalorder %s21, 0
      %p109 = por %p107, %p108
      %p110 = scmp.le.s32.totalorder 1, %s15
      %p111 = scmp.lt.s32.totalorder %s15, 3
      %p112 = pnand %p110, %p111
      %p113 = pneg %p112
      // Predicated region
      $region9: #{tpu_custom_call.1} parent=5 // pred_check
        _
      $region10: #{tpu_custom_call.1} parent=5 // pred_check_branch
        %115 = sbr.rel (%p112) target = $region12
      $region11: #{tpu_custom_call.1} parent=5 // pred_region
        %s116 = ssub.s32 %s15, 1
        // Predicated region
        $region13: #{tpu_custom_call.1} parent=11 // pred_check
          %p117 = pneg %p48
        $region14: #{tpu_custom_call.1} parent=11 // pred_check_branch
          %119 = sbr.rel (%p117) target = $region16
        $region15: #{tpu_custom_call.1} parent=11 // pred_region
          %121 = vsyncadd [#allocation6], 0
          %s123 = sshll.u32 %s0, 4
          %s124 = int_to_ptr.hbm [resolvable:$true] %s123
          %126 = dma.hbm_to_smem %s124, 16, [#allocation3], [#allocation6]
        $region16: #{tpu_custom_call.1} parent=11 // pred_fallthru
          _
      $region12: #{tpu_custom_call.1} parent=5 // pred_fallthru
        _
      %p127 = scmp.lt.s32.totalorder %s15, 2
      // Predicated region
      $region17: #{tpu_custom_call.1} parent=5 // pred_check
        %p128 = pneg %p127
      $region18: #{tpu_custom_call.1} parent=5 // pred_check_branch
        %130 = sbr.rel (%p128) target = $region20
      $region19: #{tpu_custom_call.1} parent=5 // pred_region
        // Predicated region
        $region21: #{tpu_custom_call.1} parent=19 // pred_check
          %p131 = pneg %p70
        $region22: #{tpu_custom_call.1} parent=19 // pred_check_branch
          %133 = sbr.rel (%p131) target = $region24
        $region23: #{tpu_custom_call.1} parent=19 // pred_region
          %s134 = sand.u32 %s60, 1
          %s135 = scalar_lea.sflag [#allocation4], %s134
          %s136 = sand.u32 %s60, 1
          %s137 = smul.addr %s136, 8
          %s138 = scalar_lea.vmem [#allocation7], %s137
          %s139 = smul.u32 2, %s23
          %141 = vsyncadd %s135, 0
          %s142 = smul.addr %s22, 2
          %s143 = sadd.s32 %s139, %s142
          %s144 = smul.addr %s143, 4
          %s145 = scalar_lea.hbm %s1, %s144
          %s147 = sshll.u32 %s145, 4
          %s148 = int_to_ptr.hbm [resolvable:$true] %s147
          %s149 = sshll.u32 %s138, 4
          %s150 = int_to_ptr.vmem [resolvable:$true] %s149
          %152 = dma.hbm_to_vmem [thread:$0]  %s148, 128, %s150, %s135
        $region24: #{tpu_custom_call.1} parent=19 // pred_fallthru
          _
      $region20: #{tpu_custom_call.1} parent=5 // pred_fallthru
        _
      %p153 = scmp.le.s32.totalorder 1, %s15
      %p154 = scmp.lt.s32.totalorder %s15, 3
      %p155 = pnand %p153, %p154
      %p156 = pneg %p155
      // Predicated region
      $region25: #{tpu_custom_call.1} parent=5 // pred_check
        _
      $region26: #{tpu_custom_call.1} parent=5 // pred_check_branch
        %158 = sbr.rel (%p155) target = $region28
      $region27: #{tpu_custom_call.1} parent=5 // pred_region
        %s159 = ssub.s32 %s15, 1
        // Predicated region
        $region29: #{tpu_custom_call.1} parent=27 // pred_check
          %p160 = pneg %p48
        $region30: #{tpu_custom_call.1} parent=27 // pred_check_branch
          %162 = sbr.rel (%p160) target = $region32
        $region31: #{tpu_custom_call.1} parent=27 // pred_region
          %164 = dma.done [#allocation6], 16
        $region32: #{tpu_custom_call.1} parent=27 // pred_fallthru
          _
        %s165 = sand.u32 %s63, 1
        %s166 = scalar_lea.sflag [#allocation4], %s165
        %s167 = sand.u32 %s63, 1
        %s168 = smul.addr %s167, 8
        %s169 = scalar_lea.vmem [#allocation7], %s168
        // Predicated region
        $region33: #{tpu_custom_call.1} parent=27 // pred_check
          %p170 = pneg %p76
        $region34: #{tpu_custom_call.1} parent=27 // pred_check_branch
          %172 = sbr.rel (%p170) target = $region36
        $region35: #{tpu_custom_call.1} parent=27 // pred_region
          %174 = dma.done %s166, 128
        $region36: #{tpu_custom_call.1} parent=27 // pred_fallthru
          _
        %175 = sfence
        %p176 = pneg %p48
        %p177 = pneg %p45
        %s178 = sand.u32 %s63, 1
        %s179 = scalar_lea.sflag [#allocation4], %s178
        %s180 = sand.u32 %s63, 1
        %s181 = smul.addr %s180, 8
        %s182 = scalar_lea.vmem [#allocation7], %s181
        %p183 = pneg %p76
        %p184 = pneg %p73
        %p185 = pneg %p102
        %p186 = pneg %p99
        %s187 = sand.u32 %s89, 1
        %s188 = scalar_lea.sflag [#allocation5], %s187
        %s189 = sand.u32 %s89, 1
        %s190 = scalar_lea.vmem [#allocation8], %s189
        %s191 = smul.u32 2, %s25
        %p192 = scmp.eq.s32.totalorder %s25, 0
        // Predicated region
        $region37: #{tpu_custom_call.1} parent=27 // pred_check
          %p193 = pneg %p192
        $region38: #{tpu_custom_call.1} parent=27 // pred_check_branch
          %195 = sbr.rel (%p193) target = $region40
        $region39: #{tpu_custom_call.1} parent=27 // pred_region
          %196 = vst [vmem:[#allocation2] sm:$0x1] 0.0
        $region40: #{tpu_custom_call.1} parent=27 // pred_fallthru
          _
        %v197 = vld [vmem:[%s169] sm:$0xff]
        %199 = vst [vmem:[#allocation1] ss:$2 sm:$0xff] %v197
        %v200 = vld.sshfl [vmem:[#allocation1] sm:$0xff pattern:$0x75316420]
        %v201 = vld.sshfl [vmem:[#allocation1 + $0x8] sm:$0xff pattern:$0x75316420]
        %vm204 = vcmask 1043456
        %v205 = vsel %vm204, %v200, 0.0
        %v206 = vsel %vm204, %v201, 0.0
        %v207 = vadd.f32 %v205, %v206
        %208 = vadd.xlane.f32.xlu0 %v207
        %v209 = vpop.xlane.xlu0 %208
        %v210 = vld [vmem:[#allocation2] sm:$0x1]
        %v212 = vperm.slane %v209, 0
        %v213 = vperm.slane %v209, 1
        %v214 = vperm.slane %v209, 2
        %v215 = vperm.slane %v209, 3
        %216 = vst [vmem:[#allocation1] ss:$9 sm:$0xff] %v212
        %s217 = scalar_lea.vmem [#allocation1], 1
        %218 = vst [vmem:[%s217] ss:$9 sm:$0xff] %v213
        %s219 = scalar_lea.vmem [#allocation1], 2
        %220 = vst [vmem:[%s219] ss:$9 sm:$0xff] %v214
        %s221 = scalar_lea.vmem [#allocation1], 3
        %222 = vst [vmem:[%s221] ss:$9 sm:$0xff] %v215
        %v223 = vld [vmem:[#allocation1] sm:$0xff]
        %224 = vset.pattern.permute.xlu0 0
        %225 = vperm.xlu0 %224, %v223
        %v226 = vpop.permute.xlu0 %225
        %v227 = vlaneseq
        %v228 = vand.u32 %v227, 127
        %v229 = vperm.slane %v226, %v228
        %v231 = vadd.f32 %v210, %v229
        %vm232 = vcmask 24576
        %233 = vst.msk [vmem:[#allocation2] sm:$0x1] %vm232, %v231
        // Predicated region
        $region41: #{tpu_custom_call.1} parent=27 // pred_check
          %p234 = pneg %p192
        $region42: #{tpu_custom_call.1} parent=27 // pred_check_branch
          %236 = sbr.rel (%p234) target = $region44
        $region43: #{tpu_custom_call.1} parent=27 // pred_region
          %v237 = vld [vmem:[#allocation2] sm:$0x1]
          %v238 = vmul.f32 %v237, 0.00390625
          %239 = vrot.lane.b32.xlu0 %v238, 1
          %v240 = vpop.permute.xlu0 %239
          %v241 = vadd.s32 %v228, 4294967295
          %vm242 = vcmp.ge.s32.totalorder %v241, 0
          %vm243 = vcmp.lt.s32.totalorder %v241, 4
          %vm244 = vmand %vm242, %vm243
          %v245 = vsel %vm244, %v240, 0.0
          %s246 = sld [smem:[#allocation3]]
          %v247 = vstv %s246
          %v248 = vmul.f32 %v247, %v245
          %v249 = vadd.f32 %v248, 0.0
          %s250 = sld [smem:[#allocation3 + $0x1]]
          %v251 = vstv %s250
          %v252 = vmul.f32 %v251, %v238
          %v253 = vadd.f32 %v249, %v252
          %254 = vrot.lane.b32.xlu0 %v238, 127
          %v255 = vpop.permute.xlu0 %254
          %v256 = vadd.s32 %v228, 1
          %vm257 = vcmp.ge.s32.totalorder %v256, 0
          %vm258 = vcmp.lt.s32.totalorder %v256, 4
          %vm259 = vmand %vm257, %vm258
          %v260 = vsel %vm259, %v255, 0.0
          %s261 = sld [smem:[#allocation3 + $0x2]]
          %v262 = vstv %s261
          %v263 = vmul.f32 %v262, %v260
          %v264 = vadd.f32 %v253, %v263
          %v265 = vxor.u32 %v264, 2147483648
          %v266 = vmul.f32 %v265, 1.442695
          %v267 = vpow.pop %v266
          %v268 = vadd.f32 %v267, 1.0
          %v269 = vrcp.pop %v268
          %v270 = vmul.f32 %v268, %v269
          %v271 = vsub.f32 1.0, %v270
          %v272 = vmul.f32 %v269, %v271
          %v273 = vadd.f32 %v269, %v272
          %vm274 = vweird.f32 %v268
          %vm275 = vweird.f32 %v269
          %vm276 = vmor %vm274, %vm275
          %v277 = vsel %vm276, %v269, %v273
          %v278 = vand.u32 2147483647, %v268
          %vm279 = vcmp.eq.f32.partialorder %v278, 8.507059e+37
          %v280 = vand.u32 %v268, 2147483648
          %v281 = vor.u32 1.1754944e-38, %v280
          %v282 = vsel %vm279, %v281, %v277
          %v283 = vmul.f32 1.0, %v282
          %284 = vst [vmem:[%s190] sm:$0x1] %v283
        $region44: #{tpu_custom_call.1} parent=27 // pred_fallthru
          _
        %s285 = sand.u32 %s89, 1
        %s286 = scalar_lea.sflag [#allocation5], %s285
        %s287 = sand.u32 %s89, 1
        %s288 = scalar_lea.vmem [#allocation8], %s287
        // Predicated region
        $region45: #{tpu_custom_call.1} parent=27 // pred_check
          %p289 = pneg %p99
        $region46: #{tpu_custom_call.1} parent=27 // pred_check_branch
          %291 = sbr.rel (%p289) target = $region48
        $region47: #{tpu_custom_call.1} parent=27 // pred_region
          %293 = vsyncadd %s286, 0
          %s294 = scalar_lea.hbm %s2, %s24
          %s296 = sshll.u32 %s288, 4
          %s297 = int_to_ptr.vmem [resolvable:$true] %s296
          %s298 = sshll.u32 %s294, 4
          %s299 = int_to_ptr.hbm [resolvable:$true] %s298
          %301 = dma.vmem_to_hbm [thread:$0]  %s297, 16, %s299, %s286
        $region48: #{tpu_custom_call.1} parent=27 // pred_fallthru
          _
      $region28: #{tpu_custom_call.1} parent=5 // pred_fallthru
        _
      %p302 = scmp.le.s32.totalorder 2, %s15
      // Predicated region
      $region49: #{tpu_custom_call.1} parent=5 // pred_check
        %p303 = pneg %p302
      $region50: #{tpu_custom_call.1} parent=5 // pred_check_branch
        %305 = sbr.rel (%p303) target = $region52
      $region51: #{tpu_custom_call.1} parent=5 // pred_region
        %s306 = ssub.s32 %s15, 2
        // Predicated region
        $region53: #{tpu_custom_call.1} parent=51 // pred_check
          %p307 = pneg %p105
        $region54: #{tpu_custom_call.1} parent=51 // pred_check_branch
          %309 = sbr.rel (%p307) target = $region56
        $region55: #{tpu_custom_call.1} parent=51 // pred_region
          %s310 = sand.u32 %s90, 1
          %s311 = scalar_lea.sflag [#allocation5], %s310
          %s312 = sand.u32 %s90, 1
          %s313 = scalar_lea.vmem [#allocation8], %s312
          %315 = dma.done %s311, 16
        $region56: #{tpu_custom_call.1} parent=51 // pred_fallthru
          _
      $region52: #{tpu_custom_call.1} parent=5 // pred_fallthru
        _
    $region6: #{tpu_custom_call.1} parent=1 // loop_footer
      %s19 = sadd.s32 1, %s15
    $region7: #{tpu_custom_call.1} parent=1 // loop_footer_branch
      %14 = sbr.rel target = $region3
    $region8: #{tpu_custom_call.1} parent=1 // loop_exit
      _
    %316 = vsyncpa [#allocation4], 1
    %s317 = scalar_lea.sflag [#allocation4], 1
    %318 = vsyncpa %s317, 1
    %319 = vsyncpa [#allocation5], 1
    %s320 = scalar_lea.sflag [#allocation5], 1
    %321 = vsyncpa %s320, 1
    %322 = vsyncpa [#allocation6], 1
    %s323 = scalar_lea.sflag [#allocation6], 1
    %324 = vsyncpa %s323, 1

</llo_original>
